<compile_context>
chip_gen: v5e
topology: v5e:2x2
jax: 0.10.0
libtpu: 0.0.40
codegen_flags: <defaults>
</compile_context>

<pallas_src>
import numpy as np
import jax
import jax.numpy as jnp
from jax.experimental import pallas as pl
from jax.experimental.pallas import tpu as pltpu

# ---------------- module config (matches the torch module at small shapes) ----------------
N, C, H, W = 2, 4, 16, 16          # input NCHW
POOL_HEIGHT = 4
KERNEL_WIDTHS = [4, 8]             # even widths -> post-slice widths match for the concat
N_FILTERS = [8, 16]                # (n_filters[0] per branch, n_filters[1] out of conv2)
EPS = 1e-5

HP = H // POOL_HEIGHT
M = N * HP                         # flattened (batch, pooled-row) count = 8
MAX_PAD = max(kw // 2 for kw in KERNEL_WIDTHS)
WP = W + 2 * MAX_PAD               # globally padded width = 24
F0, F1 = N_FILTERS
K = len(KERNEL_WIDTHS)

# output width after conv_i (pad kw//2) and the trailing `[..., :-1]` slice
_out_widths = [W + 2 * (kw // 2) - kw + 1 - 1 for kw in KERNEL_WIDTHS]
assert len(set(_out_widths)) == 1, "kernel widths must give matching output widths"
WO = _out_widths[0]                                    # 16
OFFSETS = [MAX_PAD - kw // 2 for kw in KERNEL_WIDTHS]  # start of each branch's window in WP

TAPS = sum(KERNEL_WIDTHS)          # 12
K_TOTAL = TAPS * C                 # im2col contraction dim = 48
P_ROWS = WO * M                    # 128 output positions -> 128 lanes
assert P_ROWS == W * M             # pooled rows reuse the same 128-lane flattening


# ---------------------------------- Pallas kernel ----------------------------------------
def mf_kernel(x_ref, scale_ref, shift_ref, wcat_t_ref, beff_ref, o_ref, ynp_ref, patch_ref):
    # x_ref: (POOL_HEIGHT, C, W*M) pooling phases, lane-dense (128 lanes).
    # Fused AvgPool((POOL_HEIGHT,1)) + eval-mode BN affine (scale pre-divided by pool size,
    # scale/shift pre-broadcast to (C, W*M)).
    psum = x_ref[0]
    for p in range(1, POOL_HEIGHT):
        psum = psum + x_ref[p]
    yn = psum * scale_ref[...] + shift_ref[...]            # (C, W*M) post-BN, un-padded

    # Zero padding of the *post-BN* data along width (== torch Conv2d zero padding):
    # memset the small (C, WP*M) buffer once, then write the un-padded middle lane window.
    ynp_ref[...] = jnp.zeros((C, WP * M), jnp.float32)
    ynp_ref[:, MAX_PAD * M:(MAX_PAD + W) * M] = yn

    # im2col directly in (K_TOTAL, P_ROWS) = (48, 128) orientation: each tap is one lane-dense
    # (C, 128) block copy from a static 8-lane-aligned window of ynp into 4 sublane rows.
    t = 0
    for kw, off in zip(KERNEL_WIDTHS, OFFSETS):
        for dw in range(kw):
            start = (off + dw) * M                          # static, multiple of 8
            patch_ref[t * C:(t + 1) * C, :] = ynp_ref[:, start:start + P_ROWS]
            t += 1

    # Single fat-contraction MXU matmul with the conv2-folded weights, natural NN orientation,
    # lane-dense (F1, 128) output; add the pre-broadcast folded bias (one vadd).
    out_t = jnp.dot(wcat_t_ref[...], patch_ref[...],
                    preferred_element_type=jnp.float32)     # (F1, P_ROWS)
    o_ref[...] = out_t + beff_ref[...]


@jax.jit
def mf_forward(x, params):
    """Forward pass matching mfmodule (eval mode). x is NCHW float32."""
    gamma, beta, rmean, rvar = params['gamma'], params['beta'], params['rmean'], params['rvar']
    conv1_ws, conv1_bs = params['conv1_ws'], params['conv1_bs']
    w2, b2 = params['w2'], params['b2']

    # ---- trace-time weight folding (exact; Dropout(0.5) is identity in eval mode) ----
    # conv2(cat_b conv1_b(y)) == sum_b conv1_b_nobias(y) @ w2_slice_b + (sum_b b1_b @ w2_slice_b + b2)
    w_rows, b_eff = [], b2
    for b, (w1, b1) in enumerate(zip(conv1_ws, conv1_bs)):
        w2_slice = w2[b * F0:(b + 1) * F0]                         # (F0, F1)
        w_eff = jnp.einsum('kcf,fg->kcg', w1, w2_slice)            # (kw, C, F1)
        w_rows.append(w_eff.reshape(-1, F1))                       # rows ordered (dw, c)
        b_eff = b_eff + b1 @ w2_slice
    wcat_t = jnp.concatenate(w_rows, axis=0).T                     # (F1, K_TOTAL)
    beff_b = jnp.broadcast_to(b_eff.reshape(F1, 1), (F1, P_ROWS))  # pre-broadcast bias

    # eval-mode BN affine folded with the 1/POOL_HEIGHT of the average pool (applied in-kernel
    # to the un-padded data so the zero padding stays exactly zero, as in torch).
    scale = gamma / jnp.sqrt(rvar + EPS)
    shift = beta - rmean * scale
    scale_b = jnp.broadcast_to((scale / POOL_HEIGHT).reshape(C, 1), (C, W * M))
    shift_b = jnp.broadcast_to(shift.reshape(C, 1), (C, W * M))

    # pure layout: NCHW -> (POOL_HEIGHT, C, W*M) pooling phases, flat index = w*M + (n*HP + hp)
    xk = x.reshape(N, C, HP, POOL_HEIGHT, W)
    xk = jnp.transpose(xk, (3, 1, 4, 0, 2)).reshape(POOL_HEIGHT, C, W * M)

    flops = 2 * F1 * K_TOTAL * P_ROWS + (POOL_HEIGHT + 2) * C * P_ROWS + F1 * P_ROWS
    bytes_acc = 4 * (POOL_HEIGHT * C * P_ROWS + 2 * C * P_ROWS
                     + F1 * K_TOTAL + 2 * F1 * P_ROWS)

    out_t = pl.pallas_call(
        mf_kernel,
        out_shape=jax.ShapeDtypeStruct((F1, P_ROWS), jnp.float32),
        in_specs=[pl.BlockSpec(memory_space=pltpu.MemorySpace.VMEM)] * 5,
        out_specs=pl.BlockSpec(memory_space=pltpu.MemorySpace.VMEM),
        scratch_shapes=[pltpu.VMEM((C, WP * M), jnp.float32),         # padded post-BN (4, 192)
                        pltpu.VMEM((K_TOTAL, P_ROWS), jnp.float32)],  # im2col patch (48, 128)
        cost_estimate=pl.CostEstimate(flops=flops, transcendentals=0,
                                      bytes_accessed=bytes_acc),
    )(xk, scale_b, shift_b, wcat_t, beff_b)

    # (F1, WO*M) -> NCHW (N, F1, HP, WO); flat lane index = w*M + (n*HP + hp)
    return jnp.transpose(out_t.reshape(F1, WO, N, HP), (2, 0, 3, 1))

# TODO(synk): Dropout(0.5) training-mode stochastic masking and BN training-mode batch statistics
#             are not implemented (eval-mode semantics only, matching the reference check).


# ------------------------------ pure-JAX reference (for check) ----------------------------
def _conv2d_ref(x_nchw, w_oihw, b, pad_w):
    out = jax.lax.conv_general_dilated(
        x_nchw, w_oihw, window_strides=(1, 1),
        padding=((0, 0), (pad_w, pad_w)),
        dimension_numbers=('NCHW', 'OIHW', 'NCHW'))
    return out + b[None, :, None, None]


def mf_reference(x, params):
    gamma, beta, rmean, rvar = params['gamma'], params['beta'], params['rmean'], params['rvar']
    pooled = x.reshape(N, C, HP, POOL_HEIGHT, W).mean(axis=3)
    yn = (pooled - rmean[None, :, None, None]) / jnp.sqrt(rvar + EPS)[None, :, None, None]
    yn = yn * gamma[None, :, None, None] + beta[None, :, None, None]
    zs = []
    for kw, w1, b1 in zip(KERNEL_WIDTHS, params['conv1_ws'], params['conv1_bs']):
        w_oihw = jnp.transpose(w1, (2, 1, 0))[:, :, None, :]        # (F0, C, 1, kw)
        zs.append(_conv2d_ref(yn, w_oihw, b1, kw // 2)[:, :, :, :-1])
    z = jnp.concatenate(zs, axis=1)
    w2_oihw = jnp.transpose(params['w2'])[:, :, None, None]          # (F1, F0*K, 1, 1)
    return _conv2d_ref(z, w2_oihw, params['b2'], 0)


# ------------------------------------------ main -----------------------------------------
if __name__ == "__main__":
    key = jax.random.PRNGKey(0)
    keys = jax.random.split(key, 16)

    x = jax.random.normal(keys[0], (N, C, H, W), jnp.float32)

    params = {
        'gamma': 1.0 + 0.1 * jax.random.normal(keys[1], (C,), jnp.float32),
        'beta':  0.1 * jax.random.normal(keys[2], (C,), jnp.float32),
        'rmean': 0.1 * jax.random.normal(keys[3], (C,), jnp.float32),
        'rvar':  0.5 + 0.5 * jnp.abs(jax.random.normal(keys[4], (C,), jnp.float32)),
        'conv1_ws': [0.2 * jax.random.normal(keys[5 + i], (kw, C, F0), jnp.float32)
                     for i, kw in enumerate(KERNEL_WIDTHS)],
        'conv1_bs': [0.1 * jax.random.normal(keys[8 + i], (F0,), jnp.float32)
                     for i in range(K)],
        'w2': 0.2 * jax.random.normal(keys[11], (F0 * K, F1), jnp.float32),
        'b2': 0.1 * jax.random.normal(keys[12], (F1,), jnp.float32),
    }

    out = mf_forward(x, params)
    out = jax.block_until_ready(out)

    ref = mf_reference(x, params)
    np.testing.assert_allclose(np.asarray(out), np.asarray(ref), rtol=2e-4, atol=2e-4)

    print("KERNEL_OK")
</pallas_src>

<mosaic_0001>
module attributes {stable_mosaic.version = 11 : i64} {
  func.func @mf_kernel(%arg0: memref<4x4x128xf32, #tpu.memory_space<vmem>>, %arg1: memref<4x128xf32, #tpu.memory_space<vmem>>, %arg2: memref<4x128xf32, #tpu.memory_space<vmem>>, %arg3: memref<16x48xf32, #tpu.memory_space<vmem>>, %arg4: memref<16x128xf32, #tpu.memory_space<vmem>>, %arg5: memref<16x128xf32, #tpu.memory_space<vmem>>, %arg6: memref<4x192xf32, #tpu.memory_space<vmem>>, %arg7: memref<48x128xf32, #tpu.memory_space<vmem>>) attributes {dimension_semantics = [], scalar_prefetch = 0 : i64, scratch_operands = 2 : i64, tpu.core_type = #tpu.core_type<tc>} {
    %c0 = arith.constant 0 : index
    %c0_0 = arith.constant 0 : index
    %c0_1 = arith.constant 0 : index
    %0 = vector.load %arg0[%c0, %c0_0, %c0_1] : memref<4x4x128xf32, #tpu.memory_space<vmem>>, vector<1x4x128xf32>
    %1 = vector.shape_cast %0 : vector<1x4x128xf32> to vector<4x128xf32>
    %c1 = arith.constant 1 : index
    %c0_2 = arith.constant 0 : index
    %c0_3 = arith.constant 0 : index
    %2 = vector.load %arg0[%c1, %c0_2, %c0_3] : memref<4x4x128xf32, #tpu.memory_space<vmem>>, vector<1x4x128xf32>
    %3 = vector.shape_cast %2 : vector<1x4x128xf32> to vector<4x128xf32>
    %4 = arith.addf %1, %3 : vector<4x128xf32>
    %c2 = arith.constant 2 : index
    %c0_4 = arith.constant 0 : index
    %c0_5 = arith.constant 0 : index
    %5 = vector.load %arg0[%c2, %c0_4, %c0_5] : memref<4x4x128xf32, #tpu.memory_space<vmem>>, vector<1x4x128xf32>
    %6 = vector.shape_cast %5 : vector<1x4x128xf32> to vector<4x128xf32>
    %7 = arith.addf %4, %6 : vector<4x128xf32>
    %c3 = arith.constant 3 : index
    %c0_6 = arith.constant 0 : index
    %c0_7 = arith.constant 0 : index
    %8 = vector.load %arg0[%c3, %c0_6, %c0_7] : memref<4x4x128xf32, #tpu.memory_space<vmem>>, vector<1x4x128xf32>
    %9 = vector.shape_cast %8 : vector<1x4x128xf32> to vector<4x128xf32>
    %10 = arith.addf %7, %9 : vector<4x128xf32>
    %c0_8 = arith.constant 0 : index
    %c0_9 = arith.constant 0 : index
    %11 = vector.load %arg1[%c0_8, %c0_9] : memref<4x128xf32, #tpu.memory_space<vmem>>, vector<4x128xf32>
    %12 = arith.mulf %10, %11 : vector<4x128xf32>
    %c0_10 = arith.constant 0 : index
    %c0_11 = arith.constant 0 : index
    %13 = vector.load %arg2[%c0_10, %c0_11] : memref<4x128xf32, #tpu.memory_space<vmem>>, vector<4x128xf32>
    %14 = arith.addf %12, %13 : vector<4x128xf32>
    %cst = arith.constant 0.000000e+00 : f32
    %15 = vector.broadcast %cst : f32 to vector<4x192xf32>
    %c0_12 = arith.constant 0 : index
    %c0_13 = arith.constant 0 : index
    %16 = vector.load %arg6[%c0_12, %c0_13] : memref<4x192xf32, #tpu.memory_space<vmem>>, vector<4x192xf32>
    tpu.vector_store %arg6[%c0_12, %c0_13], %15 {strides = array<i32>} : memref<4x192xf32, #tpu.memory_space<vmem>>, vector<4x192xf32>,
    %c0_14 = arith.constant 0 : index
    %c32 = arith.constant 32 : index
    %17 = vector.load %arg6[%c0_14, %c32] : memref<4x192xf32, #tpu.memory_space<vmem>>, vector<4x128xf32>
    tpu.vector_store %arg6[%c0_14, %c32], %14 {strides = array<i32>} : memref<4x192xf32, #tpu.memory_space<vmem>>, vector<4x128xf32>,
    %c0_15 = arith.constant 0 : index
    %c16 = arith.constant 16 : index
    %18 = vector.load %arg6[%c0_15, %c16] : memref<4x192xf32, #tpu.memory_space<vmem>>, vector<4x128xf32>
    %c0_16 = arith.constant 0 : index
    %c0_17 = arith.constant 0 : index
    %19 = vector.load %arg7[%c0_16, %c0_17] : memref<48x128xf32, #tpu.memory_space<vmem>>, vector<4x128xf32>
    tpu.vector_store %arg7[%c0_16, %c0_17], %18 {strides = array<i32>} : memref<48x128xf32, #tpu.memory_space<vmem>>, vector<4x128xf32>,
    %c0_18 = arith.constant 0 : index
    %c24 = arith.constant 24 : index
    %20 = vector.load %arg6[%c0_18, %c24] : memref<4x192xf32, #tpu.memory_space<vmem>>, vector<4x128xf32>
    %c4 = arith.constant 4 : index
    %c0_19 = arith.constant 0 : index
    %21 = vector.load %arg7[%c4, %c0_19] : memref<48x128xf32, #tpu.memory_space<vmem>>, vector<4x128xf32>
    tpu.vector_store %arg7[%c4, %c0_19], %20 {strides = array<i32>} : memref<48x128xf32, #tpu.memory_space<vmem>>, vector<4x128xf32>,
    %c0_20 = arith.constant 0 : index
    %c32_21 = arith.constant 32 : index
    %22 = vector.load %arg6[%c0_20, %c32_21] : memref<4x192xf32, #tpu.memory_space<vmem>>, vector<4x128xf32>
    %c8 = arith.constant 8 : index
    %c0_22 = arith.constant 0 : index
    %23 = vector.load %arg7[%c8, %c0_22] : memref<48x128xf32, #tpu.memory_space<vmem>>, vector<4x128xf32>
    tpu.vector_store %arg7[%c8, %c0_22], %22 {strides = array<i32>} : memref<48x128xf32, #tpu.memory_space<vmem>>, vector<4x128xf32>,
    %c0_23 = arith.constant 0 : index
    %c40 = arith.constant 40 : index
    %24 = vector.load %arg6[%c0_23, %c40] : memref<4x192xf32, #tpu.memory_space<vmem>>, vector<4x128xf32>
    %c12 = arith.constant 12 : index
    %c0_24 = arith.constant 0 : index
    %25 = vector.load %arg7[%c12, %c0_24] : memref<48x128xf32, #tpu.memory_space<vmem>>, vector<4x128xf32>
    tpu.vector_store %arg7[%c12, %c0_24], %24 {strides = array<i32>} : memref<48x128xf32, #tpu.memory_space<vmem>>, vector<4x128xf32>,
    %c0_25 = arith.constant 0 : index
    %c0_26 = arith.constant 0 : index
    %26 = vector.load %arg6[%c0_25, %c0_26] : memref<4x192xf32, #tpu.memory_space<vmem>>, vector<4x128xf32>
    %c16_27 = arith.constant 16 : index
    %c0_28 = arith.constant 0 : index
    %27 = vector.load %arg7[%c16_27, %c0_28] : memref<48x128xf32, #tpu.memory_space<vmem>>, vector<4x128xf32>
    tpu.vector_store %arg7[%c16_27, %c0_28], %26 {strides = array<i32>} : memref<48x128xf32, #tpu.memory_space<vmem>>, vector<4x128xf32>,
    %c0_29 = arith.constant 0 : index
    %c8_30 = arith.constant 8 : index
    %28 = vector.load %arg6[%c0_29, %c8_30] : memref<4x192xf32, #tpu.memory_space<vmem>>, vector<4x128xf32>
    %c20 = arith.constant 20 : index
    %c0_31 = arith.constant 0 : index
    %29 = vector.load %arg7[%c20, %c0_31] : memref<48x128xf32, #tpu.memory_space<vmem>>, vector<4x128xf32>
    tpu.vector_store %arg7[%c20, %c0_31], %28 {strides = array<i32>} : memref<48x128xf32, #tpu.memory_space<vmem>>, vector<4x128xf32>,
    %c0_32 = arith.constant 0 : index
    %c16_33 = arith.constant 16 : index
    %30 = vector.load %arg6[%c0_32, %c16_33] : memref<4x192xf32, #tpu.memory_space<vmem>>, vector<4x128xf32>
    %c24_34 = arith.constant 24 : index
    %c0_35 = arith.constant 0 : index
    %31 = vector.load %arg7[%c24_34, %c0_35] : memref<48x128xf32, #tpu.memory_space<vmem>>, vector<4x128xf32>
    tpu.vector_store %arg7[%c24_34, %c0_35], %30 {strides = array<i32>} : memref<48x128xf32, #tpu.memory_space<vmem>>, vector<4x128xf32>,
    %c0_36 = arith.constant 0 : index
    %c24_37 = arith.constant 24 : index
    %32 = vector.load %arg6[%c0_36, %c24_37] : memref<4x192xf32, #tpu.memory_space<vmem>>, vector<4x128xf32>
    %c28 = arith.constant 28 : index
    %c0_38 = arith.constant 0 : index
    %33 = vector.load %arg7[%c28, %c0_38] : memref<48x128xf32, #tpu.memory_space<vmem>>, vector<4x128xf32>
    tpu.vector_store %arg7[%c28, %c0_38], %32 {strides = array<i32>} : memref<48x128xf32, #tpu.memory_space<vmem>>, vector<4x128xf32>,
    %c0_39 = arith.constant 0 : index
    %c32_40 = arith.constant 32 : index
    %34 = vector.load %arg6[%c0_39, %c32_40] : memref<4x192xf32, #tpu.memory_space<vmem>>, vector<4x128xf32>
    %c32_41 = arith.constant 32 : index
    %c0_42 = arith.constant 0 : index
    %35 = vector.load %arg7[%c32_41, %c0_42] : memref<48x128xf32, #tpu.memory_space<vmem>>, vector<4x128xf32>
    tpu.vector_store %arg7[%c32_41, %c0_42], %34 {strides = array<i32>} : memref<48x128xf32, #tpu.memory_space<vmem>>, vector<4x128xf32>,
    %c0_43 = arith.constant 0 : index
    %c40_44 = arith.constant 40 : index
    %36 = vector.load %arg6[%c0_43, %c40_44] : memref<4x192xf32, #tpu.memory_space<vmem>>, vector<4x128xf32>
    %c36 = arith.constant 36 : index
    %c0_45 = arith.constant 0 : index
    %37 = vector.load %arg7[%c36, %c0_45] : memref<48x128xf32, #tpu.memory_space<vmem>>, vector<4x128xf32>
    tpu.vector_store %arg7[%c36, %c0_45], %36 {strides = array<i32>} : memref<48x128xf32, #tpu.memory_space<vmem>>, vector<4x128xf32>,
    %c0_46 = arith.constant 0 : index
    %c48 = arith.constant 48 : index
    %38 = vector.load %arg6[%c0_46, %c48] : memref<4x192xf32, #tpu.memory_space<vmem>>, vector<4x128xf32>
    %c40_47 = arith.constant 40 : index
    %c0_48 = arith.constant 0 : index
    %39 = vector.load %arg7[%c40_47, %c0_48] : memref<48x128xf32, #tpu.memory_space<vmem>>, vector<4x128xf32>
    tpu.vector_store %arg7[%c40_47, %c0_48], %38 {strides = array<i32>} : memref<48x128xf32, #tpu.memory_space<vmem>>, vector<4x128xf32>,
    %c0_49 = arith.constant 0 : index
    %c56 = arith.constant 56 : index
    %40 = vector.load %arg6[%c0_49, %c56] : memref<4x192xf32, #tpu.memory_space<vmem>>, vector<4x128xf32>
    %c44 = arith.constant 44 : index
    %c0_50 = arith.constant 0 : index
    %41 = vector.load %arg7[%c44, %c0_50] : memref<48x128xf32, #tpu.memory_space<vmem>>, vector<4x128xf32>
    tpu.vector_store %arg7[%c44, %c0_50], %40 {strides = array<i32>} : memref<48x128xf32, #tpu.memory_space<vmem>>, vector<4x128xf32>,
    %c0_51 = arith.constant 0 : index
    %c0_52 = arith.constant 0 : index
    %42 = vector.load %arg3[%c0_51, %c0_52] : memref<16x48xf32, #tpu.memory_space<vmem>>, vector<16x48xf32>
    %c0_53 = arith.constant 0 : index
    %c0_54 = arith.constant 0 : index
    %43 = vector.load %arg7[%c0_53, %c0_54] : memref<48x128xf32, #tpu.memory_space<vmem>>, vector<48x128xf32>
    %cst_55 = arith.constant dense<0.000000e+00> : vector<16x128xf32>
    %44 = tpu.matmul %42, %43, %cst_55 {dimension_numbers = #tpu.dot_dimension_numbers<[1], [0], [0], [1], [0, 0, 1, 1], [], []>} : vector<16x48xf32>, vector<48x128xf32>, vector<16x128xf32> -> vector<16x128xf32>
    %c0_56 = arith.constant 0 : index
    %c0_57 = arith.constant 0 : index
    %45 = vector.load %arg4[%c0_56, %c0_57] : memref<16x128xf32, #tpu.memory_space<vmem>>, vector<16x128xf32>
    %46 = arith.addf %44, %45 : vector<16x128xf32>
    %c0_58 = arith.constant 0 : index
    %c0_59 = arith.constant 0 : index
    %47 = vector.load %arg5[%c0_58, %c0_59] : memref<16x128xf32, #tpu.memory_space<vmem>>, vector<16x128xf32>
    tpu.vector_store %arg5[%c0_58, %c0_59], %46 {strides = array<i32>} : memref<16x128xf32, #tpu.memory_space<vmem>>, vector<16x128xf32>,
    return
  }
}

</mosaic_0001>

<llo_original>
// kernel: mf_forward.1
$region0: #{mf_forward.1}
  #allocation0 [shape = 'u32[]', space=smem, size = 0x4, offset = 0x4, fixed_abs, tag = 'smem constant byte address 0x4 - core index']
  #allocation1 [shape = 'u32[72,128]{1,0:T(1,128)}', space=vmem, size = 0x9000, scoped, tag = 'internal scratch']
  #allocation2 [shape = 'f32[4,192]{1,0:T(4,128)}', space=vmem, size = 0x1000, scoped, tag = 'scratch operand']
  #allocation3 [shape = 'f32[48,128]{1,0:T(8,128)}', space=vmem, size = 0x6000, scoped, tag = 'scratch operand']
  %s0 = inlined_call_operand.vmem [shape: f32[4,4,128], index: 0, kind: input, shape index: {}]
  %s1 = inlined_call_operand.vmem [shape: f32[4,128], index: 1, kind: input, shape index: {}]
  %s2 = inlined_call_operand.vmem [shape: f32[4,128], index: 2, kind: input, shape index: {}]
  %s3 = inlined_call_operand.vmem [shape: f32[16,48], index: 3, kind: input, shape index: {}]
  %s4 = inlined_call_operand.vmem [shape: f32[16,128], index: 4, kind: input, shape index: {}]
  %s5 = inlined_call_operand.vmem [shape: f32[16,128], index: 5, kind: output, shape index: {}]
  %s6 = sld [smem:[#allocation0]]
  $region30: #{mf_forward.1} parent=0
    _
  %s8 = ssub.s32 1, %s6
  %s9 = scalar_select 0, %s8, %s6
  // Predicated region
  $region2: #{mf_forward.1} parent=0 // pred_check
    _
  $region3: #{mf_forward.1} parent=0 // pred_check_branch
    %11 = sbr.rel (0) target = $region5
  $region4: #{mf_forward.1} parent=0 // pred_region
    _
  $region5: #{mf_forward.1} parent=0 // pred_fallthru
    _
  // Predicated region
  $region6: #{mf_forward.1} parent=0 // pred_check
    _
  $region7: #{mf_forward.1} parent=0 // pred_check_branch
    %13 = sbr.rel (0) target = $region9
  $region8: #{mf_forward.1} parent=0 // pred_region
    _
  $region9: #{mf_forward.1} parent=0 // pred_fallthru
    _
  // Predicated region
  $region10: #{mf_forward.1} parent=0 // pred_check
    _
  $region11: #{mf_forward.1} parent=0 // pred_check_branch
    %15 = sbr.rel (0) target = $region13
  $region12: #{mf_forward.1} parent=0 // pred_region
    _
  $region13: #{mf_forward.1} parent=0 // pred_fallthru
    _
  // Predicated region
  $region14: #{mf_forward.1} parent=0 // pred_check
    _
  $region15: #{mf_forward.1} parent=0 // pred_check_branch
    %17 = sbr.rel (0) target = $region17
  $region16: #{mf_forward.1} parent=0 // pred_region
    _
  $region17: #{mf_forward.1} parent=0 // pred_fallthru
    _
  // Predicated region
  $region18: #{mf_forward.1} parent=0 // pred_check
    _
  $region19: #{mf_forward.1} parent=0 // pred_check_branch
    %19 = sbr.rel (0) target = $region21
  $region20: #{mf_forward.1} parent=0 // pred_region
    _
  $region21: #{mf_forward.1} parent=0 // pred_fallthru
    _
  %v20 = vld [vmem:[%s0] sm:$0xf]
  %s21 = scalar_lea.vmem %s0, 4
  %v22 = vld [vmem:[%s21] sm:$0xf]
  %v23 = vadd.f32 %v20, %v22
  %s24 = scalar_lea.vmem %s0, 8
  %v25 = vld [vmem:[%s24] sm:$0xf]
  %v26 = vadd.f32 %v23, %v25
  %s27 = scalar_lea.vmem %s0, 12
  %v28 = vld [vmem:[%s27] sm:$0xf]
  %v29 = vadd.f32 %v26, %v28
  %v30 = vld [vmem:[%s1] sm:$0xf]
  %v31 = vmul.f32 %v29, %v30
  %v32 = vld [vmem:[%s2] sm:$0xf]
  %v33 = vadd.f32 %v31, %v32
  %vm34 = vcmask 1043456
  %vm35 = vcmask 523268
  %vm36 = vmor %vm35, %vm34
  %37 = vst.msk [vmem:[#allocation2] sm:$0xff] %vm36, 0.0
  %39 = vrot.lane.b32.xlu0 %v33, 32
  %v40 = vpop.permute.xlu0 %39
  %v41 = vrot.slane %v40, 4
  %vm42 = vcmask 261120
  %v43 = vsel %vm42, %v41, %v40
  %vm45 = vcmask 1043712
  %vm46 = vcmask 261124
  %vm47 = vmor %vm46, %vm45
  %48 = vst.msk [vmem:[#allocation2] sm:$0xff] %vm47, %v43
  %v49 = vld [vmem:[#allocation2] sm:$0xff]
  %51 = vst [vmem:[#allocation1] ss:$2 sm:$0xff] %v49
  %v52 = vld.sshfl [vmem:[#allocation1] sm:$0xff pattern:$0x75316420]
  %v53 = vld.sshfl [vmem:[#allocation1 + $0x8] sm:$0xff pattern:$0x75316420]
  %54 = vrot.lane.b32.xlu0 %v52, 112
  %v55 = vpop.permute.xlu0 %54
  %56 = vrot.lane.b32.xlu0 %v53, 112
  %v57 = vpop.permute.xlu0 %56
  %vm58 = vcmask 916480
  %v59 = vsel %vm58, %v55, %v57
  %61 = vst [vmem:[#allocation3] sm:$0xf] %v59
  %v62 = vld [vmem:[#allocation2] sm:$0xff]
  %64 = vst [vmem:[#allocation1] ss:$2 sm:$0xff] %v62
  %v65 = vld.sshfl [vmem:[#allocation1] sm:$0xff pattern:$0x75316420]
  %v66 = vld.sshfl [vmem:[#allocation1 + $0x8] sm:$0xff pattern:$0x75316420]
  %67 = vrot.lane.b32.xlu0 %v65, 104
  %v68 = vpop.permute.xlu0 %67
  %69 = vrot.lane.b32.xlu0 %v66, 104
  %v70 = vpop.permute.xlu0 %69
  %vm71 = vcmask 850944
  %v72 = vsel %vm71, %v68, %v70
  %74 = vst [vmem:[#allocation3 + $0x4] sm:$0xf] %v72
  %v75 = vld [vmem:[#allocation2] sm:$0xff]
  %77 = vst [vmem:[#allocation1] ss:$2 sm:$0xff] %v75
  %v78 = vld.sshfl [vmem:[#allocation1] sm:$0xff pattern:$0x75316420]
  %v79 = vld.sshfl [vmem:[#allocation1 + $0x8] sm:$0xff pattern:$0x75316420]
  %80 = vrot.lane.b32.xlu0 %v78, 96
  %v81 = vpop.permute.xlu0 %80
  %82 = vrot.lane.b32.xlu0 %v79, 96
  %v83 = vpop.permute.xlu0 %82
  %vm84 = vcmask 785408
  %v85 = vsel %vm84, %v81, %v83
  %87 = vst [vmem:[#allocation3 + $0x8] sm:$0xf] %v85
  %v88 = vld [vmem:[#allocation2] sm:$0xff]
  %90 = vst [vmem:[#allocation1] ss:$2 sm:$0xff] %v88
  %v91 = vld.sshfl [vmem:[#allocation1] sm:$0xff pattern:$0x75316420]
  %v92 = vld.sshfl [vmem:[#allocation1 + $0x8] sm:$0xff pattern:$0x75316420]
  %93 = vrot.lane.b32.xlu0 %v91, 88
  %v94 = vpop.permute.xlu0 %93
  %95 = vrot.lane.b32.xlu0 %v92, 88
  %v96 = vpop.permute.xlu0 %95
  %vm97 = vcmask 719872
  %v98 = vsel %vm97, %v94, %v96
  %100 = vst [vmem:[#allocation3 + $0xc] sm:$0xf] %v98
  %v101 = vld [vmem:[#allocation2] sm:$0xf]
  %102 = vst [vmem:[#allocation3 + $0x10] sm:$0xf] %v101
  %v103 = vld [vmem:[#allocation2] sm:$0xff]
  %105 = vst [vmem:[#allocation1] ss:$2 sm:$0xff] %v103
  %v106 = vld.sshfl [vmem:[#allocation1] sm:$0xff pattern:$0x75316420]
  %v107 = vld.sshfl [vmem:[#allocation1 + $0x8] sm:$0xff pattern:$0x75316420]
  %108 = vrot.lane.b32.xlu0 %v106, 120
  %v109 = vpop.permute.xlu0 %108
  %110 = vrot.lane.b32.xlu0 %v107, 120
  %v111 = vpop.permute.xlu0 %110
  %vm112 = vcmask 982016
  %v113 = vsel %vm112, %v109, %v111
  %115 = vst [vmem:[#allocation3 + $0x14] sm:$0xf] %v113
  %v116 = vld [vmem:[#allocation2] sm:$0xff]
  %118 = vst [vmem:[#allocation1] ss:$2 sm:$0xff] %v116
  %v119 = vld.sshfl [vmem:[#allocation1] sm:$0xff pattern:$0x75316420]
  %v120 = vld.sshfl [vmem:[#allocation1 + $0x8] sm:$0xff pattern:$0x75316420]
  %121 = vrot.lane.b32.xlu0 %v119, 112
  %v122 = vpop.permute.xlu0 %121
  %123 = vrot.lane.b32.xlu0 %v120, 112
  %v124 = vpop.permute.xlu0 %123
  %v125 = vsel %vm58, %v122, %v124
  %127 = vst [vmem:[#allocation3 + $0x18] sm:$0xf] %v125
  %v128 = vld [vmem:[#allocation2] sm:$0xff]
  %130 = vst [vmem:[#allocation1] ss:$2 sm:$0xff] %v128
  %v131 = vld.sshfl [vmem:[#allocation1] sm:$0xff pattern:$0x75316420]
  %v132 = vld.sshfl [vmem:[#allocation1 + $0x8] sm:$0xff pattern:$0x75316420]
  %133 = vrot.lane.b32.xlu0 %v131, 104
  %v134 = vpop.permute.xlu0 %133
  %135 = vrot.lane.b32.xlu0 %v132, 104
  %v136 = vpop.permute.xlu0 %135
  %v137 = vsel %vm71, %v134, %v136
  %139 = vst [vmem:[#allocation3 + $0x1c] sm:$0xf] %v137
  %v140 = vld [vmem:[#allocation2] sm:$0xff]
  %142 = vst [vmem:[#allocation1] ss:$2 sm:$0xff] %v140
  %v143 = vld.sshfl [vmem:[#allocation1] sm:$0xff pattern:$0x75316420]
  %v144 = vld.sshfl [vmem:[#allocation1 + $0x8] sm:$0xff pattern:$0x75316420]
  %145 = vrot.lane.b32.xlu0 %v143, 96
  %v146 = vpop.permute.xlu0 %145
  %147 = vrot.lane.b32.xlu0 %v144, 96
  %v148 = vpop.permute.xlu0 %147
  %v149 = vsel %vm84, %v146, %v148
  %151 = vst [vmem:[#allocation3 + $0x20] sm:$0xf] %v149
  %v152 = vld [vmem:[#allocation2] sm:$0xff]
  %154 = vst [vmem:[#allocation1] ss:$2 sm:$0xff] %v152
  %v155 = vld.sshfl [vmem:[#allocation1] sm:$0xff pattern:$0x75316420]
  %v156 = vld.sshfl [vmem:[#allocation1 + $0x8] sm:$0xff pattern:$0x75316420]
  %157 = vrot.lane.b32.xlu0 %v155, 88
  %v158 = vpop.permute.xlu0 %157
  %159 = vrot.lane.b32.xlu0 %v156, 88
  %v160 = vpop.permute.xlu0 %159
  %v161 = vsel %vm97, %v158, %v160
  %163 = vst [vmem:[#allocation3 + $0x24] sm:$0xf] %v161
  %v164 = vld [vmem:[#allocation2] sm:$0xff]
  %166 = vst [vmem:[#allocation1] ss:$2 sm:$0xff] %v164
  %v167 = vld.sshfl [vmem:[#allocation1] sm:$0xff pattern:$0x75316420]
  %v168 = vld.sshfl [vmem:[#allocation1 + $0x8] sm:$0xff pattern:$0x75316420]
  %169 = vrot.lane.b32.xlu0 %v167, 80
  %v170 = vpop.permute.xlu0 %169
  %171 = vrot.lane.b32.xlu0 %v168, 80
  %v172 = vpop.permute.xlu0 %171
  %vm173 = vcmask 654336
  %v174 = vsel %vm173, %v170, %v172
  %176 = vst [vmem:[#allocation3 + $0x28] sm:$0xf] %v174
  %v177 = vld [vmem:[#allocation2] sm:$0xff]
  %179 = vst [vmem:[#allocation1] ss:$2 sm:$0xff] %v177
  %v180 = vld.sshfl [vmem:[#allocation1] sm:$0xff pattern:$0x75316420]
  %v181 = vld.sshfl [vmem:[#allocation1 + $0x8] sm:$0xff pattern:$0x75316420]
  %182 = vrot.lane.b32.xlu0 %v180, 72
  %v183 = vpop.permute.xlu0 %182
  %184 = vrot.lane.b32.xlu0 %v181, 72
  %v185 = vpop.permute.xlu0 %184
  %vm186 = vcmask 588800
  %v187 = vsel %vm186, %v183, %v185
  %189 = vst [vmem:[#allocation3 + $0x2c] sm:$0xf] %v187
  %v190 = vld [vmem:[%s3] sm:$0xff]
  %v191 = vld [vmem:[%s3 + $0x8] sm:$0xff]
  %v192 = vld [vmem:[#allocation3] sm:$0xff]
  %v193 = vld [vmem:[#allocation3 + $0x8] sm:$0xff]
  %v194 = vld [vmem:[#allocation3 + $0x10] sm:$0xff]
  %v195 = vld [vmem:[#allocation3 + $0x18] sm:$0xff]
  %v196 = vld [vmem:[#allocation3 + $0x20] sm:$0xff]
  %v197 = vld [vmem:[#allocation3 + $0x28] sm:$0xff]
  %v198 = vld [vmem:[%s4] sm:$0xff]
  %v199 = vld [vmem:[%s4 + $0x8] sm:$0xff]
  %vm200 = vcmask 392192
  %v202 = vsel %vm200, %v190, 0
  %v205 = vsel %vm200, %v191, 0
  %207 = vmatpush.msra.mxu0 0.0
  %208 = vmatpush.msra.mxu0 0.0
  %209 = vmatpush.msra.mxu0 0.0
  %210 = vmatpush.msra.mxu0 0.0
  %211 = vmatpush.msra.mxu0 0.0
  %212 = vmatpush.msra.mxu0 0.0
  %213 = vmatpush.msra.mxu0 0.0
  %214 = vmatpush.msra.mxu0 0.0
  %215 = vmatpush.msra.mxu0 0.0
  %216 = vmatpush.msra.mxu0 0.0
  %217 = vmatpush.msra.mxu0 %v197
  %218 = vmatpush.msra.mxu0 %v196
  %219 = vmatpush.msra.mxu0 %v195
  %220 = vmatpush.msra.mxu0 %v194
  %221 = vmatpush.msra.mxu0 %v193
  %222 = vmatpush.msra.mxu0 %v192
  %223 = vmatmul.f32.gmra.mxu0 %v202
  %v224 = vpop.f32.mrf.mxu0
  %v225 = vadd.f32 %v198, %v224
  %226 = vmatmul.f32.gmra.mxu0 %v205
  %v227 = vpop.f32.mrf.mxu0
  %v228 = vadd.f32 %v199, %v227
  %229 = vdwg.mxu0
  %230 = vst [vmem:[%s5] sm:$0xff] %v225
  %231 = vst [vmem:[%s5 + $0x8] sm:$0xff] %v228
  // Predicated region
  $region22: #{mf_forward.1} parent=0 // pred_check
    _
  $region23: #{mf_forward.1} parent=0 // pred_check_branch
    %233 = sbr.rel (0) target = $region25
  $region24: #{mf_forward.1} parent=0 // pred_region
    _
  $region25: #{mf_forward.1} parent=0 // pred_fallthru
    _
  // Predicated region
  $region26: #{mf_forward.1} parent=0 // pred_check
    _
  $region27: #{mf_forward.1} parent=0 // pred_check_branch
    %235 = sbr.rel (0) target = $region29
  $region28: #{mf_forward.1} parent=0 // pred_region
    _
  $region29: #{mf_forward.1} parent=0 // pred_fallthru
    _

</llo_original>
